<compile_context>
chip_gen: v7x
topology: tpu7x:2x2x1
jax: 0.10.0
libtpu: 0.0.40
codegen_flags: <defaults>
</compile_context>

<pallas_src>
import math

import jax
import jax.numpy as jnp
from jax.experimental import pallas as pl
from jax.experimental.pallas import tpu as pltpu

_FREQ_MAP = {'h': 4, 't': 5, 's': 6, 'm': 1, 'a': 1, 'w': 2, 'd': 3, 'b': 3}


def _tf_embed_kernel(x_ref, wm_ref, bias_ref, o_ref):
    """One row-tile of the fused concat+Linear.

    x_ref   : VMEM (tm, d_inp)        -- time-feature marks for this row tile
    wm_ref  : VMEM (d_inp, d_model_p) -- W[:, :d_inp].T   (resident, constant block)
    bias_ref: VMEM (1, d_model_p)     -- (1/scale - 0.5) * W[:, d_inp].T (resident)
    o_ref   : VMEM (tm, d_model_p)
    """
    acc = jnp.dot(x_ref[...], wm_ref[...], preferred_element_type=jnp.float32)
    o_ref[...] = (acc + bias_ref[...]).astype(o_ref.dtype)


def _pick_row_tile(m: int, d_model_p: int, out_itemsize: int,
                   x_itemsize: int, d_inp: int) -> int:
    """Row-tile size.

    Single grid step whenever the double-buffered tiles fit a conservative
    ~8 MiB budget (well under the 16 MiB v5e default scoped-VMEM limit).
    Otherwise the largest multiple-of-8 tile up to 1024 rows.
    """
    budget = 8 * 1024 * 1024  # bytes for 2x(output tile) + 2x(input tile)
    per_row = 2 * (d_model_p * out_itemsize + d_inp * x_itemsize)
    max_tm = max(8, (budget // per_row) // 8 * 8)
    max_tm = min(max_tm, 1024)
    m_pad = (m + 7) // 8 * 8
    if m_pad <= max_tm:
        return m_pad          # one grid step: no artificial split of small M
    return max_tm


def time_feature_embedding(x: jax.Array, w: jax.Array, scale=1,
                           out_dtype=None) -> jax.Array:
    """Equivalent of TimeFeatureEmbedding_ScaleFormer.forward(x, scale).

    x    : (B, L, d_inp) float — time-feature marks (kept in its native dtype).
    w    : (d_model, d_inp + 1) float — nn.Linear(d_inp+1, d_model, bias=False).weight
    scale: python / scalar number.
    Returns (B, L, d_model), dtype = out_dtype (default: x.dtype).
    """
    B, L, d_inp = x.shape
    d_model, d_in_w = w.shape
    assert d_in_w == d_inp + 1, (d_in_w, d_inp)
    if out_dtype is None:
        out_dtype = x.dtype

    M = B * L
    x2 = x.reshape(M, d_inp)

    # Fold the concatenated constant column into a precomputed bias row:
    #   out = x @ W[:, :d_inp].T + (1/scale - 0.5) * W[:, d_inp].T
    wt = jnp.transpose(w).astype(jnp.float32)            # (d_inp+1, d_model)
    w_main = wt[:d_inp, :]                                # (d_inp, d_model)
    bias = (1.0 / scale - 0.5) * wt[d_inp:, :]            # (1, d_model), f32

    # Enforce a lane-dense output: pad d_model up to a multiple of 128.
    d_model_p = ((d_model + 127) // 128) * 128
    if d_model_p != d_model:
        pad = d_model_p - d_model
        w_main = jnp.pad(w_main, ((0, 0), (0, pad)))
        bias = jnp.pad(bias, ((0, 0), (0, pad)))

    # MXU takes x's natural dtype (bf16 at full rate); accumulate in f32.
    w_main = w_main.astype(x.dtype)

    out_itemsize = jnp.dtype(out_dtype).itemsize
    x_itemsize = jnp.dtype(x.dtype).itemsize
    tm = _pick_row_tile(M, d_model_p, out_itemsize, x_itemsize, d_inp)
    grid = (pl.cdiv(M, tm),)

    out = pl.pallas_call(
        _tf_embed_kernel,
        out_shape=jax.ShapeDtypeStruct((M, d_model_p), out_dtype),
        grid_spec=pl.GridSpec(
            grid=grid,
            in_specs=[
                pl.BlockSpec((tm, d_inp), lambda i: (i, 0)),
                pl.BlockSpec((d_inp, d_model_p), lambda i: (0, 0)),   # resident
                pl.BlockSpec((1, d_model_p), lambda i: (0, 0)),       # resident
            ],
            out_specs=pl.BlockSpec((tm, d_model_p), lambda i: (i, 0)),
        ),
        compiler_params=pltpu.CompilerParams(
            dimension_semantics=("parallel",),
        ),
    )(x2, w_main, bias)

    if d_model_p != d_model:
        out = out[:, :d_model]
    return out.reshape(B, L, d_model)


def _reference(x: jax.Array, w: jax.Array, scale) -> jax.Array:
    """Plain-JAX mirror of the PyTorch forward (main path), in float32."""
    B, L, _ = x.shape
    c = jnp.full((B, L, 1), 1.0 / scale - 0.5, dtype=jnp.float32)
    x_cat = jnp.concatenate([x.astype(jnp.float32), c], axis=2)
    return jnp.einsum('bld,md->blm', x_cat, w.astype(jnp.float32))


if __name__ == "__main__":
    key = jax.random.PRNGKey(0)
    k1, k2, k3, k4 = jax.random.split(key, 4)

    # Shapes consistent with the module: batch=2, seq=8, freq='h' -> d_inp=4.
    B, L = 2, 8
    freq = 'h'
    d_inp = _FREQ_MAP[freq]            # 4  -> Linear input dim = 5
    d_model = 128                      # lane-dense output (multiple of 128)
    scale = 2

    x = jax.random.normal(k1, (B, L, d_inp), dtype=jnp.float32)
    w = jax.random.normal(k2, (d_model, d_inp + 1), dtype=jnp.float32) / math.sqrt(d_inp + 1)

    out = jax.block_until_ready(time_feature_embedding(x, w, scale=scale))
    ref = _reference(x, w, scale)
    assert out.shape == (B, L, d_model), out.shape
    assert out.dtype == jnp.float32
    assert jnp.allclose(out, ref, atol=1e-4, rtol=1e-4), float(jnp.max(jnp.abs(out - ref)))

    # Check 2: odd sequence length -> single padded tile / masked output rows.
    B2, L2 = 2, 13
    x2 = jax.random.normal(k3, (B2, L2, d_inp), dtype=jnp.float32)
    out2 = jax.block_until_ready(time_feature_embedding(x2, w, scale=1))
    ref2 = _reference(x2, w, 1)
    assert out2.shape == (B2, L2, d_model), out2.shape
    assert jnp.allclose(out2, ref2, atol=1e-4, rtol=1e-4), float(jnp.max(jnp.abs(out2 - ref2)))

    # Check 3: d_model not a multiple of 128 -> wrapper pads to lane-dense width
    # and slices back.
    d_model3 = 96
    w3 = jax.random.normal(k4, (d_model3, d_inp + 1), dtype=jnp.float32) / math.sqrt(d_inp + 1)
    out3 = jax.block_until_ready(time_feature_embedding(x, w3, scale=scale))
    ref3 = _reference(x, w3, scale)
    assert out3.shape == (B, L, d_model3), out3.shape
    assert jnp.allclose(out3, ref3, atol=1e-4, rtol=1e-4), float(jnp.max(jnp.abs(out3 - ref3)))

    # Check 4: bf16 input/output path (halved HBM write traffic); loose tolerance.
    x_bf = x.astype(jnp.bfloat16)
    out_bf = jax.block_until_ready(time_feature_embedding(x_bf, w, scale=scale))
    assert out_bf.shape == (B, L, d_model), out_bf.shape
    assert out_bf.dtype == jnp.bfloat16
    assert jnp.allclose(out_bf.astype(jnp.float32), ref, atol=5e-2, rtol=5e-2), \
        float(jnp.max(jnp.abs(out_bf.astype(jnp.float32) - ref)))

    print("KERNEL_OK")
</pallas_src>

<mosaic_0001>
module attributes {stable_mosaic.version = 11 : i64} {
  func.func @_tf_embed_kernel(%arg0: i32, %arg1: memref<16x4xf32, #tpu.memory_space<vmem>>, %arg2: memref<4x128xf32, #tpu.memory_space<vmem>>, %arg3: memref<1x128xf32, #tpu.memory_space<vmem>>, %arg4: memref<16x128xf32, #tpu.memory_space<vmem>>) attributes {dimension_semantics = [#tpu.dimension_semantics<parallel>], iteration_bounds = array<i64: 1>, scalar_prefetch = 0 : i64, scratch_operands = 0 : i64, tpu.core_type = #tpu.core_type<tc>, window_params = [{transform_indices = @transform_0, window_bounds = array<i64: 16, 4>}, {pipeline_mode = #tpu.pipeline_mode<synchronous>, transform_indices = @transform_1, window_bounds = array<i64: 4, 128>}, {pipeline_mode = #tpu.pipeline_mode<synchronous>, transform_indices = @transform_2, window_bounds = array<i64: 1, 128>}, {transform_indices = @transform_3, window_bounds = array<i64: 16, 128>}]} {
    %c0 = arith.constant 0 : index
    %c0_0 = arith.constant 0 : index
    %0 = vector.load %arg1[%c0, %c0_0] : memref<16x4xf32, #tpu.memory_space<vmem>>, vector<16x4xf32>
    %c0_1 = arith.constant 0 : index
    %c0_2 = arith.constant 0 : index
    %1 = vector.load %arg2[%c0_1, %c0_2] : memref<4x128xf32, #tpu.memory_space<vmem>>, vector<4x128xf32>
    %cst = arith.constant dense<0.000000e+00> : vector<16x128xf32>
    %2 = tpu.matmul %0, %1, %cst {dimension_numbers = #tpu.dot_dimension_numbers<[1], [0], [0], [1], [0, 0, 1, 1], [], []>} : vector<16x4xf32>, vector<4x128xf32>, vector<16x128xf32> -> vector<16x128xf32>
    %c0_3 = arith.constant 0 : index
    %c0_4 = arith.constant 0 : index
    %3 = vector.load %arg3[%c0_3, %c0_4] : memref<1x128xf32, #tpu.memory_space<vmem>>, vector<1x128xf32>
    %4 = vector.broadcast %3 : vector<1x128xf32> to vector<16x128xf32>
    %5 = arith.addf %2, %4 : vector<16x128xf32>
    %c0_5 = arith.constant 0 : index
    %c0_6 = arith.constant 0 : index
    %6 = vector.load %arg4[%c0_5, %c0_6] : memref<16x128xf32, #tpu.memory_space<vmem>>, vector<16x128xf32>
    tpu.vector_store %arg4[%c0_5, %c0_6], %5 {strides = array<i32>} : memref<16x128xf32, #tpu.memory_space<vmem>>, vector<16x128xf32>,
    return
  }
  func.func @transform_0(%arg0: i32) -> (i32, i32) {
    %c0_i32 = arith.constant 0 : i32
    %c0_i32_0 = arith.constant 0 : i32
    return %arg0, %c0_i32 : i32, i32
  }
  func.func @transform_1(%arg0: i32) -> (i32, i32) {
    %c0_i32 = arith.constant 0 : i32
    %c0_i32_0 = arith.constant 0 : i32
    %c0_i32_1 = arith.constant 0 : i32
    return %c0_i32, %c0_i32_0 : i32, i32
  }
  func.func @transform_2(%arg0: i32) -> (i32, i32) {
    %c0_i32 = arith.constant 0 : i32
    %c0_i32_0 = arith.constant 0 : i32
    %c0_i32_1 = arith.constant 0 : i32
    return %c0_i32, %c0_i32_0 : i32, i32
  }
  func.func @transform_3(%arg0: i32) -> (i32, i32) {
    %c0_i32 = arith.constant 0 : i32
    %c0_i32_0 = arith.constant 0 : i32
    return %arg0, %c0_i32 : i32, i32
  }
}

</mosaic_0001>

<llo_original>
// kernel: tpu_custom_call.1
$region0: #{tpu_custom_call.1}
  #allocation0 [shape = 'u32[]', space=smem, size = 0x4, offset = 0x4, fixed_abs, tag = 'smem constant byte address 0x4 - core index']
  #allocation1 [shape = 'u32[144,128]{1,0:T(1,128)}', space=vmem, size = 0x12000, scoped, tag = 'internal scratch']
  %s0 = inlined_call_operand.vmem [shape: f32[16,4], index: 0, kind: input, shape index: {}]
  %s1 = inlined_call_operand.vmem [shape: f32[4,128], index: 1, kind: input, shape index: {}]
  %s2 = inlined_call_operand.vmem [shape: f32[1,128], index: 2, kind: input, shape index: {}]
  %s3 = inlined_call_operand.hbm [shape: f32[16,128], index: 3, kind: output, shape index: {}]
  %s4 = sld [smem:[#allocation0]]
  $region22: #{tpu_custom_call.1} parent=0
    _
  %s6 = ssub.s32 1, %s4
  %s7 = scalar_select 0, %s6, %s4
  $region1: #{tpu_custom_call.1} parent=0
    #allocation2 [shape = 'u8[8192]{0}', space=vmem, size = 0x2000, scoped, tag = 'output window, operand 0, single buffered']
    #allocation3 [shape = 's32[1]{0}', space=sflag, size = 0x4, scoped, tag = 'scoped memory for tpu_custom_call.1']
    %8 = vsyncpa [#allocation3], 0
    // Predicated region
    $region2: #{tpu_custom_call.1} parent=1 // pred_check
      _
    $region3: #{tpu_custom_call.1} parent=1 // pred_check_branch
      %10 = sbr.rel (0) target = $region5
    $region4: #{tpu_custom_call.1} parent=1 // pred_region
      _
    $region5: #{tpu_custom_call.1} parent=1 // pred_fallthru
      _
    // Predicated region
    $region6: #{tpu_custom_call.1} parent=1 // pred_check
      _
    $region7: #{tpu_custom_call.1} parent=1 // pred_check_branch
      %12 = sbr.rel (0) target = $region9
    $region8: #{tpu_custom_call.1} parent=1 // pred_region
      _
    $region9: #{tpu_custom_call.1} parent=1 // pred_fallthru
      _
    // Predicated region
    $region10: #{tpu_custom_call.1} parent=1 // pred_check
      _
    $region11: #{tpu_custom_call.1} parent=1 // pred_check_branch
      %14 = sbr.rel (0) target = $region13
    $region12: #{tpu_custom_call.1} parent=1 // pred_region
      _
    $region13: #{tpu_custom_call.1} parent=1 // pred_fallthru
      _
    %v15 = vld [vmem:[%s0] sm:$0xff]
    %v16 = vld [vmem:[%s0 + $0x8] sm:$0xff]
    %v17 = vld [vmem:[%s1] sm:$0xf]
    %v18 = vld [vmem:[%s2] sm:$0x1]
    %v20 = vlaneseq
    %v21 = vshrl.u32 %v20, 7
    %v22 = vsub.s32 0, %v21
    %v23 = vrot.slane %v18, %v22
    %vm25 = vcmask 31744
    %v27 = vsel %vm25, %v15, 0
    %v30 = vsel %vm25, %v16, 0
    %vm32 = vcmask 1043456
    %v34 = vsel %vm32, %v17, 0
    %36 = vmatprep.subr.mxu0 0.0
    %37 = vmatpush1.msra.mxu0 %v34
    %38 = vmatprep.subr.mxu0 0.0
    %39 = vmatpush1.msra.mxu0 0.0
    %40 = vmatprep.subr.mxu0 0.0
    %41 = vmatpush1.msra.mxu0 0.0
    %42 = vmatprep.subr.mxu0 0.0
    %43 = vmatpush1.msra.mxu0 0.0
    %44 = vmatprep.subr.mxu0 0.0
    %45 = vmatpush1.msra.mxu0 0.0
    %46 = vmatprep.subr.mxu0 0.0
    %47 = vmatpush1.msra.mxu0 0.0
    %48 = vmatprep.subr.mxu0 0.0
    %49 = vmatpush1.msra.mxu0 0.0
    %50 = vmatprep.subr.mxu0 0.0
    %51 = vmatpush1.msra.mxu0 0.0
    %52 = vmatprep.subr.mxu0 0.0
    %53 = vmatpush1.msra.mxu0 0.0
    %54 = vmatprep.subr.mxu0 0.0
    %55 = vmatpush1.msra.mxu0 0.0
    %56 = vmatprep.subr.mxu0 0.0
    %57 = vmatpush1.msra.mxu0 0.0
    %58 = vmatprep.subr.mxu0 0.0
    %59 = vmatpush1.msra.mxu0 0.0
    %60 = vmatprep.subr.mxu0 0.0
    %61 = vmatpush1.msra.mxu0 0.0
    %62 = vmatprep.subr.mxu0 0.0
    %63 = vmatpush1.msra.mxu0 0.0
    %64 = vmatprep.subr.mxu0 0.0
    %65 = vmatpush1.msra.mxu0 0.0
    %66 = vmatprep.subr.mxu0 0.0
    %67 = vmatpush1.msra.mxu0 0.0
    %68 = vmatprep.subr.mxu0 0.0
    %69 = vmatpush1.msra.mxu0 0.0
    %70 = vmatprep.subr.mxu0 0.0
    %71 = vmatpush1.msra.mxu0 0.0
    %72 = vmatprep.subr.mxu0 0.0
    %73 = vmatpush1.msra.mxu0 0.0
    %74 = vmatprep.subr.mxu0 0.0
    %75 = vmatpush1.msra.mxu0 0.0
    %76 = vmatprep.subr.mxu0 0.0
    %77 = vmatpush1.msra.mxu0 0.0
    %78 = vmatprep.subr.mxu0 0.0
    %79 = vmatpush1.msra.mxu0 0.0
    %80 = vmatprep.subr.mxu0 0.0
    %81 = vmatpush1.msra.mxu0 0.0
    %82 = vmatprep.subr.mxu0 0.0
    %83 = vmatpush1.msra.mxu0 0.0
    %84 = vmatprep.subr.mxu0 0.0
    %85 = vmatpush1.msra.mxu0 0.0
    %86 = vmatprep.subr.mxu0 0.0
    %87 = vmatpush1.msra.mxu0 0.0
    %88 = vmatprep.subr.mxu0 0.0
    %89 = vmatpush1.msra.mxu0 0.0
    %90 = vmatprep.subr.mxu0 0.0
    %91 = vmatpush1.msra.mxu0 0.0
    %92 = vmatprep.subr.mxu0 0.0
    %93 = vmatpush1.msra.mxu0 0.0
    %94 = vmatprep.subr.mxu0 0.0
    %95 = vmatpush1.msra.mxu0 0.0
    %96 = vmatprep.subr.mxu0 0.0
    %97 = vmatpush1.msra.mxu0 0.0
    %98 = vmatprep.subr.mxu0 0.0
    %99 = vmatpush1.msra.mxu0 0.0
    %100 = vmatprep.mubr.f32.mxu0 0.0
    %101 = vmatmul.mubr.f32.gmra.mrb[0].mxu0 %v27
    %v102 = vpop.f32.mrb[0].mxu0
    %v103 = vadd.f32 %v23, %v102
    %v104 = vpop.f32.mrb[0].mxu0
    %105 = vmatprep.mubr.f32.mxu0 0.0
    %106 = vmatmul.mubr.f32.gmra.mrb[0].mxu0 %v30
    %v107 = vpop.f32.mrb[0].mxu0
    %v108 = vadd.f32 %v23, %v107
    %v109 = vpop.f32.mrb[0].mxu0
    %110 = vdwg.mxu0
    %111 = vst [vmem:[#allocation2] sm:$0xff] %v103
    %112 = vst [vmem:[#allocation2 + $0x8] sm:$0xff] %v108
    // Predicated region
    $region14: #{tpu_custom_call.1} parent=1 // pred_check
      _
    $region15: #{tpu_custom_call.1} parent=1 // pred_check_branch
      %114 = sbr.rel (0) target = $region17
    $region16: #{tpu_custom_call.1} parent=1 // pred_region
      %s116 = ssub.s32 256, 256
      %117 = vsyncadd [#allocation3], %s116
      %s118 = sshll.u32 [#allocation2], 4
      %s119 = int_to_ptr.vmem [resolvable:$true] %s118
      %124 = dma.vmem_to_hbm [thread:$0]  %s119, 256, %s3, [#allocation3], 128, 128, 8
    $region17: #{tpu_custom_call.1} parent=1 // pred_fallthru
      _
    // Predicated region
    $region18: #{tpu_custom_call.1} parent=1 // pred_check
      _
    $region19: #{tpu_custom_call.1} parent=1 // pred_check_branch
      %126 = sbr.rel (0) target = $region21
    $region20: #{tpu_custom_call.1} parent=1 // pred_region
      %127 = dma.done [#allocation3], 256
    $region21: #{tpu_custom_call.1} parent=1 // pred_fallthru
      _
    %128 = vsyncpa [#allocation3], 1

</llo_original>
